<compile_context>
chip_gen: v6e
topology: v6e:2x2x1
jax: 0.10.0
libtpu: 0.0.40
codegen_flags: <defaults>
</compile_context>

<pallas_src>
import functools

import jax
import jax.numpy as jnp
from jax import lax
from jax.experimental import pallas as pl
from jax.experimental.pallas import tpu as pltpu


def _round_up(x, m):
    return ((x + m - 1) // m) * m


def _sublane_pack(dtype):
    """Native sublane packing: 8 for 32-bit, 16 for 16-bit, 32 for 8-bit."""
    return 8 * max(1, 4 // jnp.dtype(dtype).itemsize)


def _pick_batch_tile(b_total, target):
    """Full B for small batches (always a legal block); otherwise a
    multiple-of-8 divisor near `target`.  Prefer >= 2 batch blocks so the
    'parallel' axis can shard across TensorCores (v7x megacore)."""
    if b_total <= target:
        if b_total >= 16 and b_total % 16 == 0:
            return b_total // 2          # 2 blocks, still (8, *)-aligned
        return b_total
    t = (target // 8) * 8
    while t >= 8:
        if b_total % t == 0:
            return t
        t -= 8
    return b_total                       # awkward batch: full-B block


def _pick_seq_tile(s_pad, pack, target, fits):
    """Largest pack-aligned divisor of s_pad that fits the VMEM budget and is
    <= target (falls back to the smallest fitting divisor / `pack`)."""
    cands = [d for d in range(pack, s_pad + 1, pack) if s_pad % d == 0]
    fitting = [d for d in cands if fits(d)]
    if not fitting:
        # TODO(synk): even the minimal pack-aligned tile exceeds the VMEM
        # budget (huge H); a hidden-dim split would be needed to do better.
        return pack
    below = [d for d in fitting if d <= target]
    return max(below) if below else min(fitting)


def _make_kernel(tb, ts, hidden, s_orig, mid_tile, mid_off):
    inv_s = 1.0 / float(s_orig)

    def kernel(emph_ref, ones_ref, hs_ref, dw_ref, db_ref, ow_ref, ob_ref,
               out_ref, acc_ref, mid_ref):
        # emph_ref: (1,)        SMEM  emphasis_factor
        # ones_ref: (TB,TB*TS)  VMEM  block-diagonal ones (constant, 1-buffered)
        # hs_ref:   (TB,TS,H)   VMEM  activation tile (native dtype)
        # dw_ref:   (H,H)       VMEM  dense weight, PyTorch (out, in) layout
        # db_ref:   (1,H)       VMEM  dense bias
        # ow_ref:   (L,H)       VMEM  out_proj weight, PyTorch (out, in) layout
        # ob_ref:   (1,L)       VMEM  out_proj bias
        # out_ref:  (TB,L)      VMEM  logits (resident across the S axis)
        # acc_ref:  (TB,H) f32  VMEM  running sum over S
        # mid_ref:  (TB,H) f32  VMEM  middle-token embedding
        s = pl.program_id(1)
        ns = pl.num_programs(1)

        @pl.when(s == 0)
        def _init():
            acc_ref[...] = jnp.zeros_like(acc_ref)

        tile = hs_ref[...]                                   # native dtype

        # Sequence-tile sum on the (otherwise idle) MXU:
        #   (TB, TB*TS) block-diag ones @ (TB*TS, H) collapsed tile -> (TB, H).
        # TS is a multiple of the native sublane packing, so collapsing the
        # leading dims is layout-preserving (no relayout copy, no f32 temp).
        tile2d = tile.reshape(tb * ts, hidden)
        acc_ref[...] += lax.dot_general(
            ones_ref[...], tile2d,
            dimension_numbers=(((1,), (0,)), ((), ())),
            preferred_element_type=jnp.float32)

        @pl.when(s == mid_tile)
        def _capture_middle():
            mid_ref[...] = tile[:, mid_off, :].astype(jnp.float32)

        @pl.when(s == ns - 1)
        def _epilogue():
            emph = emph_ref[0]                               # f32 scalar (SMEM)
            combined = acc_ref[...] * inv_s + mid_ref[...] * emph   # (TB,H) f32
            # dropout (inference) -> identity
            x = lax.dot_general(
                combined.astype(dw_ref.dtype), dw_ref[...],
                dimension_numbers=(((1,), (1,)), ((), ())),   # combined @ Wd.T
                preferred_element_type=jnp.float32)
            x = jnp.tanh(x + db_ref[...].astype(jnp.float32))  # EUP path, f32
            # dropout (inference) -> identity
            logits = lax.dot_general(
                x.astype(ow_ref.dtype), ow_ref[...],
                dimension_numbers=(((1,), (1,)), ((), ())),   # x @ Wo.T
                preferred_element_type=jnp.float32)
            logits = logits + ob_ref[...].astype(jnp.float32)
            out_ref[...] = logits.astype(out_ref.dtype)

    return kernel


@functools.partial(jax.jit, static_argnames=("tile_s", "tile_b"))
def esm_classification_head(hidden_states, emphasis_factor, dense_w, dense_b,
                            out_w, out_b, *, tile_s=512, tile_b=32):
    """hidden_states: (B, S, H); dense_w: (H, H) and out_w: (L, H) in PyTorch
    (out, in) layout.  Returns logits (B, L)."""
    B, S, H = hidden_states.shape
    L = out_w.shape[0]

    hs_dtype = hidden_states.dtype
    hs_item = jnp.dtype(hs_dtype).itemsize
    dw_item = jnp.dtype(dense_w.dtype).itemsize
    ow_item = jnp.dtype(out_w.dtype).itemsize
    out_dtype = jnp.result_type(hs_dtype, dense_w.dtype, out_w.dtype)
    out_item = jnp.dtype(out_dtype).itemsize

    # ---- hardware-aware VMEM budget (64 MiB v7x, 128 MiB v5e/v6e) ----------
    vmem_cap = 64 << 20                          # conservative fallback
    try:
        vmem_cap = int(pltpu.get_tpu_info().vmem_capacity_bytes)
    except Exception:
        pass
    vmem_budget = int(vmem_cap * 0.8)            # headroom for Mosaic scratch

    # ---- tile selection ------------------------------------------------------
    TB = _pick_batch_tile(B, tile_b)
    pack = _sublane_pack(hs_dtype)               # 8 f32 / 16 bf16 / 32 int8
    s_pad = _round_up(S, pack)

    weights_bytes = (H * H + H) * dw_item + (L * H + L) * ow_item  # 1-buffered

    def footprint(ts):
        act = 2 * TB * ts * H * hs_item          # double-buffered activations
        ones = TB * (TB * ts) * hs_item          # single-buffered
        outb = 2 * TB * L * out_item
        scratch = 2 * TB * H * 4
        epi = 4 * TB * max(H, 128) * 4           # f32 epilogue temporaries
        return act + ones + weights_bytes + outb + scratch + epi

    TS = _pick_seq_tile(s_pad, pack, tile_s,
                        lambda ts: footprint(ts) <= vmem_budget)

    middle_idx = S // 2
    mid_tile, mid_off = middle_idx // TS, middle_idx % TS

    # Zero-pad awkward sequence lengths (zeros don't affect the sum; the mean
    # still divides by the original S).
    hs = hidden_states
    if s_pad != S:
        hs = jnp.pad(hs, ((0, 0), (0, s_pad - S), (0, 0)))

    emph = jnp.asarray(emphasis_factor, jnp.float32).reshape(1)
    db = jnp.asarray(dense_b).reshape(1, H)
    ob = jnp.asarray(out_b).reshape(1, L)

    # Block-diagonal ones: ones_block[b, b*TS + s] = 1 — turns the per-tile
    # sequence sum into a single MXU matmul against the collapsed tile.
    ones_block = (jnp.arange(TB)[:, None]
                  == (jnp.arange(TB * TS)[None, :] // TS)).astype(hs_dtype)

    vmem_limit = int(min(vmem_cap, max(vmem_budget, int(footprint(TS) * 1.2))))

    cost = pl.CostEstimate(
        flops=int(2 * B * s_pad * H + 2 * B * H * (H + L)),
        transcendentals=int(B * H),
        bytes_accessed=int(B * s_pad * H * hs_item + weights_bytes
                           + B * L * out_item),
    )

    kernel = _make_kernel(TB, TS, H, S, mid_tile, mid_off)
    const = pl.Buffered(1)   # constant blocks: single-buffer (VMEM, esp. v7x)

    return pl.pallas_call(
        kernel,
        out_shape=jax.ShapeDtypeStruct((B, L), out_dtype),
        grid_spec=pltpu.PrefetchScalarGridSpec(
            num_scalar_prefetch=0,
            grid=(B // TB, s_pad // TS),
            in_specs=[
                pl.BlockSpec(memory_space=pltpu.MemorySpace.SMEM),      # emphasis
                pl.BlockSpec((TB, TB * TS), lambda b, s: (0, 0),
                             pipeline_mode=const),                      # ones
                pl.BlockSpec((TB, TS, H), lambda b, s: (b, s, 0)),      # activations
                pl.BlockSpec((H, H), lambda b, s: (0, 0),
                             pipeline_mode=const),                      # dense W
                pl.BlockSpec((1, H), lambda b, s: (0, 0),
                             pipeline_mode=const),                      # dense b
                pl.BlockSpec((L, H), lambda b, s: (0, 0),
                             pipeline_mode=const),                      # out_proj W
                pl.BlockSpec((1, L), lambda b, s: (0, 0),
                             pipeline_mode=const),                      # out_proj b
            ],
            out_specs=pl.BlockSpec((TB, L), lambda b, s: (b, 0)),
            scratch_shapes=[
                pltpu.VMEM((TB, H), jnp.float32),   # running sum over S
                pltpu.VMEM((TB, H), jnp.float32),   # middle-token embedding
            ],
        ),
        compiler_params=pltpu.CompilerParams(
            dimension_semantics=("parallel", "arbitrary"),
            vmem_limit_bytes=vmem_limit),
        cost_estimate=cost,
    )(emph, ones_block, hs, dense_w, db, out_w, ob)


def reference_jax(hidden_states, emphasis_factor, dense_w, dense_b, out_w, out_b):
    hs = hidden_states.astype(jnp.float32)
    S = hs.shape[1]
    middle = hs[:, S // 2, :]
    combined = middle * jnp.float32(emphasis_factor) + jnp.mean(hs, axis=1)
    x = jnp.tanh(combined @ dense_w.astype(jnp.float32).T
                 + dense_b.astype(jnp.float32))
    return x @ out_w.astype(jnp.float32).T + out_b.astype(jnp.float32)


if __name__ == "__main__":
    key = jax.random.PRNGKey(0)

    # --- f32 check: B=2, S=8, H=32, L=4 -------------------------------------
    B, S, H, L = 2, 8, 32, 4
    k_hs, k_dw, k_db, k_ow, k_ob = jax.random.split(key, 5)
    hidden_states = jax.random.normal(k_hs, (B, S, H), dtype=jnp.float32)
    dense_w = jax.random.normal(k_dw, (H, H), dtype=jnp.float32) * 0.1
    dense_b = jax.random.normal(k_db, (H,), dtype=jnp.float32) * 0.1
    out_w = jax.random.normal(k_ow, (L, H), dtype=jnp.float32) * 0.1
    out_b = jax.random.normal(k_ob, (L,), dtype=jnp.float32) * 0.1
    emphasis_factor = jnp.float32(1.0)   # nn.Parameter(torch.tensor(1.0))

    logits = esm_classification_head(hidden_states, emphasis_factor,
                                     dense_w, dense_b, out_w, out_b)
    jax.block_until_ready(logits)
    ref = reference_jax(hidden_states, emphasis_factor,
                        dense_w, dense_b, out_w, out_b)
    assert logits.shape == (B, L)
    assert jnp.allclose(logits, ref, atol=1e-4, rtol=1e-4), "f32 mismatch vs reference"

    # --- bf16 check (16-sublane packing + bf16 MXU path, looser tolerance) ---
    B2, S2, H2, L2 = 2, 16, 64, 4
    k_hs, k_dw, k_db, k_ow, k_ob = jax.random.split(jax.random.PRNGKey(1), 5)
    hs_bf = jax.random.normal(k_hs, (B2, S2, H2), dtype=jnp.float32).astype(jnp.bfloat16)
    dw_bf = (jax.random.normal(k_dw, (H2, H2), jnp.float32) * 0.1).astype(jnp.bfloat16)
    db_bf = (jax.random.normal(k_db, (H2,), jnp.float32) * 0.1).astype(jnp.bfloat16)
    ow_bf = (jax.random.normal(k_ow, (L2, H2), jnp.float32) * 0.1).astype(jnp.bfloat16)
    ob_bf = (jax.random.normal(k_ob, (L2,), jnp.float32) * 0.1).astype(jnp.bfloat16)

    logits_bf = esm_classification_head(hs_bf, emphasis_factor,
                                        dw_bf, db_bf, ow_bf, ob_bf)
    jax.block_until_ready(logits_bf)
    ref_bf = reference_jax(hs_bf, emphasis_factor, dw_bf, db_bf, ow_bf, ob_bf)
    assert jnp.allclose(logits_bf.astype(jnp.float32), ref_bf,
                        atol=5e-2, rtol=5e-2), "bf16 mismatch vs reference"

    # TODO(synk): dropout is identity (eval mode); training-mode dropout would
    # need pltpu.prng_seed / prng_random_bits masking, intentionally not faked.
    print("KERNEL_OK")
</pallas_src>

<mosaic_0001>
module attributes {stable_mosaic.version = 11 : i64} {
  func.func @kernel(%arg0: i32, %arg1: i32, %arg2: memref<1xf32, #tpu.memory_space<smem>>, %arg3: memref<2x16xf32, #tpu.memory_space<vmem>>, %arg4: memref<2x8x32xf32, #tpu.memory_space<vmem>>, %arg5: memref<32x32xf32, #tpu.memory_space<vmem>>, %arg6: memref<1x32xf32, #tpu.memory_space<vmem>>, %arg7: memref<4x32xf32, #tpu.memory_space<vmem>>, %arg8: memref<1x4xf32, #tpu.memory_space<vmem>>, %arg9: memref<2x4xf32, #tpu.memory_space<vmem>>, %arg10: memref<2x32xf32, #tpu.memory_space<vmem>>, %arg11: memref<2x32xf32, #tpu.memory_space<vmem>>) attributes {dimension_semantics = [#tpu.dimension_semantics<parallel>, #tpu.dimension_semantics<arbitrary>], iteration_bounds = array<i64: 1, 1>, scalar_prefetch = 0 : i64, scratch_operands = 2 : i64, tpu.core_type = #tpu.core_type<tc>, window_params = [{transform_indices = @transform_0, window_bounds = array<i64: 1>}, {pipeline_mode = #tpu.pipeline_mode<synchronous>, transform_indices = @transform_1, window_bounds = array<i64: 2, 16>}, {transform_indices = @transform_2, window_bounds = array<i64: 2, 8, 32>}, {pipeline_mode = #tpu.pipeline_mode<synchronous>, transform_indices = @transform_3, window_bounds = array<i64: 32, 32>}, {pipeline_mode = #tpu.pipeline_mode<synchronous>, transform_indices = @transform_4, window_bounds = array<i64: 1, 32>}, {pipeline_mode = #tpu.pipeline_mode<synchronous>, transform_indices = @transform_5, window_bounds = array<i64: 4, 32>}, {pipeline_mode = #tpu.pipeline_mode<synchronous>, transform_indices = @transform_6, window_bounds = array<i64: 1, 4>}, {transform_indices = @transform_7, window_bounds = array<i64: 2, 4>}]} {
    %c0_i32 = arith.constant 0 : i32
    %0 = arith.cmpi eq, %arg1, %c0_i32 : i32
    %1 = arith.extui %0 : i1 to i32
    %c0_i32_0 = arith.constant 0 : i32
    %2 = arith.cmpi ne, %1, %c0_i32_0 : i32
    scf.if %2 {
      %cst_13 = arith.constant 0.000000e+00 : f32
      %16 = vector.broadcast %cst_13 : f32 to vector<2x32xf32>
      %c0_14 = arith.constant 0 : index
      %c0_15 = arith.constant 0 : index
      %17 = vector.load %arg10[%c0_14, %c0_15] : memref<2x32xf32, #tpu.memory_space<vmem>>, vector<2x32xf32>
      tpu.vector_store %arg10[%c0_14, %c0_15], %16 {strides = array<i32>} : memref<2x32xf32, #tpu.memory_space<vmem>>, vector<2x32xf32>,
    } else {
    }
    %c0 = arith.constant 0 : index
    %c0_1 = arith.constant 0 : index
    %c0_2 = arith.constant 0 : index
    %3 = vector.load %arg4[%c0, %c0_1, %c0_2] : memref<2x8x32xf32, #tpu.memory_space<vmem>>, vector<2x8x32xf32>
    %4 = vector.shape_cast %3 : vector<2x8x32xf32> to vector<16x32xf32>
    %c0_3 = arith.constant 0 : index
    %c0_4 = arith.constant 0 : index
    %5 = vector.load %arg10[%c0_3, %c0_4] : memref<2x32xf32, #tpu.memory_space<vmem>>, vector<2x32xf32>
    %c0_5 = arith.constant 0 : index
    %c0_6 = arith.constant 0 : index
    %6 = vector.load %arg3[%c0_5, %c0_6] : memref<2x16xf32, #tpu.memory_space<vmem>>, vector<2x16xf32>
    %cst = arith.constant dense<0.000000e+00> : vector<2x32xf32>
    %7 = tpu.matmul %6, %4, %cst {dimension_numbers = #tpu.dot_dimension_numbers<[1], [0], [0], [1], [0, 0, 1, 1], [], []>} : vector<2x16xf32>, vector<16x32xf32>, vector<2x32xf32> -> vector<2x32xf32>
    %8 = arith.addf %5, %7 : vector<2x32xf32>
    %c0_7 = arith.constant 0 : index
    %c0_8 = arith.constant 0 : index
    %9 = vector.load %arg10[%c0_7, %c0_8] : memref<2x32xf32, #tpu.memory_space<vmem>>, vector<2x32xf32>
    tpu.vector_store %arg10[%c0_7, %c0_8], %8 {strides = array<i32>} : memref<2x32xf32, #tpu.memory_space<vmem>>, vector<2x32xf32>,
    %c0_i32_9 = arith.constant 0 : i32
    %10 = arith.cmpi eq, %arg1, %c0_i32_9 : i32
    %11 = arith.extui %10 : i1 to i32
    %c0_i32_10 = arith.constant 0 : i32
    %12 = arith.cmpi ne, %11, %c0_i32_10 : i32
    scf.if %12 {
      %16 = vector.extract_strided_slice %3 {offsets = [0, 4, 0], sizes = [2, 1, 32], strides = [1, 1, 1]} : vector<2x8x32xf32> to vector<2x1x32xf32>
      %17 = vector.shape_cast %16 : vector<2x1x32xf32> to vector<2x32xf32>
      %c0_13 = arith.constant 0 : index
      %c0_14 = arith.constant 0 : index
      %18 = vector.load %arg11[%c0_13, %c0_14] : memref<2x32xf32, #tpu.memory_space<vmem>>, vector<2x32xf32>
      tpu.vector_store %arg11[%c0_13, %c0_14], %17 {strides = array<i32>} : memref<2x32xf32, #tpu.memory_space<vmem>>, vector<2x32xf32>,
    } else {
    }
    %c0_i32_11 = arith.constant 0 : i32
    %13 = arith.cmpi eq, %arg1, %c0_i32_11 : i32
    %14 = arith.extui %13 : i1 to i32
    %c0_i32_12 = arith.constant 0 : i32
    %15 = arith.cmpi ne, %14, %c0_i32_12 : i32
    scf.if %15 {
      %c0_13 = arith.constant 0 : index
      %16 = memref.load %arg2[%c0_13] : memref<1xf32, #tpu.memory_space<smem>>
      %c0_14 = arith.constant 0 : index
      %c0_15 = arith.constant 0 : index
      %17 = vector.load %arg10[%c0_14, %c0_15] : memref<2x32xf32, #tpu.memory_space<vmem>>, vector<2x32xf32>
      %cst_16 = arith.constant 1.250000e-01 : f32
      %18 = vector.broadcast %cst_16 : f32 to vector<2x32xf32>
      %19 = arith.mulf %17, %18 : vector<2x32xf32>
      %c0_17 = arith.constant 0 : index
      %c0_18 = arith.constant 0 : index
      %20 = vector.load %arg11[%c0_17, %c0_18] : memref<2x32xf32, #tpu.memory_space<vmem>>, vector<2x32xf32>
      %21 = vector.broadcast %16 : f32 to vector<2x32xf32>
      %22 = arith.mulf %20, %21 : vector<2x32xf32>
      %23 = arith.addf %19, %22 : vector<2x32xf32>
      %c0_19 = arith.constant 0 : index
      %c0_20 = arith.constant 0 : index
      %24 = vector.load %arg5[%c0_19, %c0_20] : memref<32x32xf32, #tpu.memory_space<vmem>>, vector<32x32xf32>
      %cst_21 = arith.constant dense<0.000000e+00> : vector<2x32xf32>
      %25 = tpu.matmul %23, %24, %cst_21 {dimension_numbers = #tpu.dot_dimension_numbers<[1], [1], [0], [0], [0, 0, 1, 0], [], []>} : vector<2x32xf32>, vector<32x32xf32>, vector<2x32xf32> -> vector<2x32xf32>
      %c0_22 = arith.constant 0 : index
      %c0_23 = arith.constant 0 : index
      %26 = vector.load %arg6[%c0_22, %c0_23] : memref<1x32xf32, #tpu.memory_space<vmem>>, vector<1x32xf32>
      %27 = vector.broadcast %26 : vector<1x32xf32> to vector<2x32xf32>
      %28 = arith.addf %25, %27 : vector<2x32xf32>
      %29 = math.tanh %28 : vector<2x32xf32>
      %c0_24 = arith.constant 0 : index
      %c0_25 = arith.constant 0 : index
      %30 = vector.load %arg7[%c0_24, %c0_25] : memref<4x32xf32, #tpu.memory_space<vmem>>, vector<4x32xf32>
      %cst_26 = arith.constant dense<0.000000e+00> : vector<2x4xf32>
      %31 = tpu.matmul %29, %30, %cst_26 {dimension_numbers = #tpu.dot_dimension_numbers<[1], [1], [0], [0], [0, 0, 1, 0], [], []>} : vector<2x32xf32>, vector<4x32xf32>, vector<2x4xf32> -> vector<2x4xf32>
      %c0_27 = arith.constant 0 : index
      %c0_28 = arith.constant 0 : index
      %32 = vector.load %arg8[%c0_27, %c0_28] : memref<1x4xf32, #tpu.memory_space<vmem>>, vector<1x4xf32>
      %33 = vector.broadcast %32 : vector<1x4xf32> to vector<2x4xf32>
      %34 = arith.addf %31, %33 : vector<2x4xf32>
      %c0_29 = arith.constant 0 : index
      %c0_30 = arith.constant 0 : index
      %35 = vector.load %arg9[%c0_29, %c0_30] : memref<2x4xf32, #tpu.memory_space<vmem>>, vector<2x4xf32>
      tpu.vector_store %arg9[%c0_29, %c0_30], %34 {strides = array<i32>} : memref<2x4xf32, #tpu.memory_space<vmem>>, vector<2x4xf32>,
    } else {
    }
    return
  }
  func.func @transform_0(%arg0: i32, %arg1: i32) -> i32 {
    %c0_i32 = arith.constant 0 : i32
    %c0_i32_0 = arith.constant 0 : i32
    return %c0_i32 : i32
  }
  func.func @transform_1(%arg0: i32, %arg1: i32) -> (i32, i32) {
    %c0_i32 = arith.constant 0 : i32
    %c0_i32_0 = arith.constant 0 : i32
    %c0_i32_1 = arith.constant 0 : i32
    return %c0_i32, %c0_i32_0 : i32, i32
  }
  func.func @transform_2(%arg0: i32, %arg1: i32) -> (i32, i32, i32) {
    %c0_i32 = arith.constant 0 : i32
    %c0_i32_0 = arith.constant 0 : i32
    return %arg0, %arg1, %c0_i32 : i32, i32, i32
  }
  func.func @transform_3(%arg0: i32, %arg1: i32) -> (i32, i32) {
    %c0_i32 = arith.constant 0 : i32
    %c0_i32_0 = arith.constant 0 : i32
    %c0_i32_1 = arith.constant 0 : i32
    return %c0_i32, %c0_i32_0 : i32, i32
  }
  func.func @transform_4(%arg0: i32, %arg1: i32) -> (i32, i32) {
    %c0_i32 = arith.constant 0 : i32
    %c0_i32_0 = arith.constant 0 : i32
    %c0_i32_1 = arith.constant 0 : i32
    return %c0_i32, %c0_i32_0 : i32, i32
  }
  func.func @transform_5(%arg0: i32, %arg1: i32) -> (i32, i32) {
    %c0_i32 = arith.constant 0 : i32
    %c0_i32_0 = arith.constant 0 : i32
    %c0_i32_1 = arith.constant 0 : i32
    return %c0_i32, %c0_i32_0 : i32, i32
  }
  func.func @transform_6(%arg0: i32, %arg1: i32) -> (i32, i32) {
    %c0_i32 = arith.constant 0 : i32
    %c0_i32_0 = arith.constant 0 : i32
    %c0_i32_1 = arith.constant 0 : i32
    return %c0_i32, %c0_i32_0 : i32, i32
  }
  func.func @transform_7(%arg0: i32, %arg1: i32) -> (i32, i32) {
    %c0_i32 = arith.constant 0 : i32
    %c0_i32_0 = arith.constant 0 : i32
    return %arg0, %c0_i32 : i32, i32
  }
}

</mosaic_0001>

<llo_original>
// kernel: esm_classification_head.1
$region0: #{esm_classification_head.1}
  #allocation0 [shape = 'u32[]', space=smem, size = 0x4, offset = 0x4, fixed_abs, tag = 'smem constant byte address 0x4 - core index']
  #allocation1 [shape = 'u32[144,128]{1,0:T(1,128)}', space=vmem, size = 0x12000, scoped, tag = 'internal scratch']
  #allocation2 [shape = 'f32[2,32]{1,0:T(2,128)}', space=vmem, size = 0x400, scoped, tag = 'scratch operand']
  #allocation3 [shape = 'f32[2,32]{1,0:T(2,128)}', space=vmem, size = 0x400, scoped, tag = 'scratch operand']
  #allocation4 [shape = 'f32[1]{0:T(128)S(6)}', space=smem, size = 0x200, scoped, tag = 'scoped memory for esm_classification_head.1']
  %s0 = inlined_call_operand.<no memory space> [shape: f32[1], index: 0, kind: input, shape index: {}]
  %s1 = inlined_call_operand.vmem [shape: f32[2,16], index: 1, kind: input, shape index: {}]
  %s2 = inlined_call_operand.hbm [shape: f32[2,8,32], index: 2, kind: input, shape index: {}]
  %s3 = inlined_call_operand.hbm [shape: f32[32,32], index: 3, kind: input, shape index: {}]
  %s4 = inlined_call_operand.vmem [shape: f32[1,32], index: 4, kind: input, shape index: {}]
  %s5 = inlined_call_operand.vmem [shape: f32[4,32], index: 5, kind: input, shape index: {}]
  %s6 = inlined_call_operand.vmem [shape: f32[1,4], index: 6, kind: input, shape index: {}]
  %s7 = inlined_call_operand.hbm [shape: f32[2,4], index: 7, kind: output, shape index: {}]
  %s8 = sld [smem:[#allocation0]]
  $region54: #{esm_classification_head.1} parent=0
    _
  %s10 = ssub.s32 1, %s8
  %s11 = scalar_select 0, %s10, %s8
  %12 = sst [smem:[#allocation4]] %s0
  $region1: #{esm_classification_head.1} parent=0
    #allocation5 [shape = 'u8[8192]{0}', space=vmem, size = 0x2000, scoped, tag = 'input window, operand 2, single buffered']
    #allocation6 [shape = 's32[1]{0}', space=sflag, size = 0x4, scoped, tag = 'scoped memory for esm_classification_head.1']
    #allocation7 [shape = 's32[1]{0}', space=sflag, size = 0x4, scoped, tag = 'scoped memory for esm_classification_head.1']
    #allocation8 [shape = 'u8[16384]{0}', space=vmem, size = 0x4000, scoped, tag = 'input window, operand 3, single buffered']
    #allocation9 [shape = 's32[1]{0}', space=sflag, size = 0x4, scoped, tag = 'scoped memory for esm_classification_head.1']
    #allocation10 [shape = 'u8[1024]{0}', space=vmem, size = 0x400, scoped, tag = 'output window, operand 0, single buffered']
    %13 = vsyncpa [#allocation6], 0
    %14 = vsyncpa [#allocation9], 0
    %15 = vsyncpa [#allocation7], 0
    // Predicated region
    $region2: #{esm_classification_head.1} parent=1 // pred_check
      _
    $region3: #{esm_classification_head.1} parent=1 // pred_check_branch
      %17 = sbr.rel (0) target = $region5
    $region4: #{esm_classification_head.1} parent=1 // pred_region
      _
    $region5: #{esm_classification_head.1} parent=1 // pred_fallthru
      _
    // Predicated region
    $region6: #{esm_classification_head.1} parent=1 // pred_check
      _
    $region7: #{esm_classification_head.1} parent=1 // pred_check_branch
      %19 = sbr.rel (0) target = $region9
    $region8: #{esm_classification_head.1} parent=1 // pred_region
      _
    $region9: #{esm_classification_head.1} parent=1 // pred_fallthru
      _
    // Predicated region
    $region10: #{esm_classification_head.1} parent=1 // pred_check
      _
    $region11: #{esm_classification_head.1} parent=1 // pred_check_branch
      %21 = sbr.rel (0) target = $region13
    $region12: #{esm_classification_head.1} parent=1 // pred_region
      %s23 = ssub.s32 256, 256
      %24 = vsyncadd [#allocation6], %s23
      %s25 = sshll.u32 [#allocation5], 4
      %s26 = int_to_ptr.vmem [resolvable:$true] %s25
      %31 = dma.hbm_to_vmem [thread:$0]  %s2, 256, %s26, [#allocation6], 128, 128, 8
    $region13: #{esm_classification_head.1} parent=1 // pred_fallthru
      _
    // Predicated region
    $region14: #{esm_classification_head.1} parent=1 // pred_check
      _
    $region15: #{esm_classification_head.1} parent=1 // pred_check_branch
      %33 = sbr.rel (0) target = $region17
    $region16: #{esm_classification_head.1} parent=1 // pred_region
      %s35 = ssub.s32 512, 512
      %36 = vsyncadd [#allocation9], %s35
      %s37 = sshll.u32 [#allocation8], 4
      %s38 = int_to_ptr.vmem [resolvable:$true] %s37
      %43 = dma.hbm_to_vmem [thread:$0]  %s3, 512, %s38, [#allocation9], 128, 128, 8
    $region17: #{esm_classification_head.1} parent=1 // pred_fallthru
      _
    // Predicated region
    $region18: #{esm_classification_head.1} parent=1 // pred_check
      _
    $region19: #{esm_classification_head.1} parent=1 // pred_check_branch
      %45 = sbr.rel (0) target = $region21
    $region20: #{esm_classification_head.1} parent=1 // pred_region
      _
    $region21: #{esm_classification_head.1} parent=1 // pred_fallthru
      _
    // Predicated region
    $region22: #{esm_classification_head.1} parent=1 // pred_check
      _
    $region23: #{esm_classification_head.1} parent=1 // pred_check_branch
      %47 = sbr.rel (0) target = $region25
    $region24: #{esm_classification_head.1} parent=1 // pred_region
      _
    $region25: #{esm_classification_head.1} parent=1 // pred_fallthru
      _
    // Predicated region
    $region26: #{esm_classification_head.1} parent=1 // pred_check
      _
    $region27: #{esm_classification_head.1} parent=1 // pred_check_branch
      %49 = sbr.rel (0) target = $region29
    $region28: #{esm_classification_head.1} parent=1 // pred_region
      _
    $region29: #{esm_classification_head.1} parent=1 // pred_fallthru
      _
    // Predicated region
    $region30: #{esm_classification_head.1} parent=1 // pred_check
      _
    $region31: #{esm_classification_head.1} parent=1 // pred_check_branch
      %51 = sbr.rel (0) target = $region33
    $region32: #{esm_classification_head.1} parent=1 // pred_region
      %52 = dma.done [#allocation6], 256
    $region33: #{esm_classification_head.1} parent=1 // pred_fallthru
      _
    // Predicated region
    $region34: #{esm_classification_head.1} parent=1 // pred_check
      _
    $region35: #{esm_classification_head.1} parent=1 // pred_check_branch
      %54 = sbr.rel (0) target = $region37
    $region36: #{esm_classification_head.1} parent=1 // pred_region
      %55 = dma.done [#allocation9], 512
    $region37: #{esm_classification_head.1} parent=1 // pred_fallthru
      _
    %p56 = scmp.eq.s32.totalorder 0, 0
    // Predicated region
    $region38: #{esm_classification_head.1} parent=1 // pred_check
      %p57 = pneg %p56
    $region39: #{esm_classification_head.1} parent=1 // pred_check_branch
      %59 = sbr.rel (%p57) target = $region41
    $region40: #{esm_classification_head.1} parent=1 // pred_region
      %vm60 = vcmask 254976
      %61 = vst.msk [vmem:[#allocation2] sm:$0x3] %vm60, 0.0
    $region41: #{esm_classification_head.1} parent=1 // pred_fallthru
      _
    %v62 = vld [vmem:[#allocation5] sm:$0xff]
    %v63 = vld [vmem:[#allocation5 + $0x8] sm:$0xff]
    %v64 = vld [vmem:[#allocation2] sm:$0x3]
    %v65 = vld [vmem:[%s1] sm:$0x3]
    %vm66 = vcmask 130048
    %v68 = vsel %vm66, %v65, 0
    %70 = vmatprep.subr.mxu0 0.0
    %71 = vmatpush1.msra.mxu0 0.0
    %72 = vmatprep.subr.mxu0 0.0
    %73 = vmatpush1.msra.mxu0 0.0
    %74 = vmatprep.subr.mxu0 0.0
    %75 = vmatpush1.msra.mxu0 0.0
    %76 = vmatprep.subr.mxu0 0.0
    %77 = vmatpush1.msra.mxu0 0.0
    %78 = vmatprep.subr.mxu0 0.0
    %79 = vmatpush1.msra.mxu0 0.0
    %80 = vmatprep.subr.mxu0 0.0
    %81 = vmatpush1.msra.mxu0 0.0
    %82 = vmatprep.subr.mxu0 0.0
    %83 = vmatpush1.msra.mxu0 0.0
    %84 = vmatprep.subr.mxu0 0.0
    %85 = vmatpush1.msra.mxu0 0.0
    %86 = vmatprep.subr.mxu0 0.0
    %87 = vmatpush1.msra.mxu0 0.0
    %88 = vmatprep.subr.mxu0 0.0
    %89 = vmatpush1.msra.mxu0 0.0
    %90 = vmatprep.subr.mxu0 0.0
    %91 = vmatpush1.msra.mxu0 0.0
    %92 = vmatprep.subr.mxu0 0.0
    %93 = vmatpush1.msra.mxu0 0.0
    %94 = vmatprep.subr.mxu0 0.0
    %95 = vmatpush1.msra.mxu0 0.0
    %96 = vmatprep.subr.mxu0 0.0
    %97 = vmatpush1.msra.mxu0 0.0
    %98 = vmatprep.subr.mxu0 0.0
    %99 = vmatpush1.msra.mxu0 %v63
    %100 = vmatprep.subr.mxu0 0.0
    %101 = vmatpush1.msra.mxu0 %v62
    %102 = vmatprep.subr.mxu0 0.0
    %103 = vmatpush2.msra.mxu0 0.0
    %104 = vmatprep.subr.mxu0 0.0
    %105 = vmatpush2.msra.mxu0 0.0
    %106 = vmatprep.subr.mxu0 0.0
    %107 = vmatpush2.msra.mxu0 0.0
    %108 = vmatprep.subr.mxu0 0.0
    %109 = vmatpush2.msra.mxu0 0.0
    %110 = vmatprep.subr.mxu0 0.0
    %111 = vmatpush2.msra.mxu0 0.0
    %112 = vmatprep.subr.mxu0 0.0
    %113 = vmatpush2.msra.mxu0 0.0
    %114 = vmatprep.subr.mxu0 0.0
    %115 = vmatpush2.msra.mxu0 0.0
    %116 = vmatprep.subr.mxu0 0.0
    %117 = vmatpush2.msra.mxu0 0.0
    %118 = vmatprep.subr.mxu0 0.0
    %119 = vmatpush2.msra.mxu0 0.0
    %120 = vmatprep.subr.mxu0 0.0
    %121 = vmatpush2.msra.mxu0 0.0
    %122 = vmatprep.subr.mxu0 0.0
    %123 = vmatpush2.msra.mxu0 0.0
    %124 = vmatprep.subr.mxu0 0.0
    %125 = vmatpush2.msra.mxu0 0.0
    %126 = vmatprep.subr.mxu0 0.0
    %127 = vmatpush2.msra.mxu0 0.0
    %128 = vmatprep.subr.mxu0 0.0
    %129 = vmatpush2.msra.mxu0 0.0
    %130 = vmatprep.subr.mxu0 0.0
    %131 = vmatpush2.msra.mxu0 0.0
    %132 = vmatprep.subr.mxu0 0.0
    %133 = vmatpush2.msra.mxu0 0.0
    %134 = vmatprep.mubr.f32.mxu0 0.0
    %135 = vmatmul.mubr.f32.gmra.mxu0 %v68
    %v136 = vpop.f32.mrf.mxu0
    %v137 = vadd.f32 0.0, %v136
    %v138 = vpop.f32.mrf.mxu0
    %139 = vdwg.mxu0
    %v140 = vadd.f32 %v64, %v137
    %vm141 = vcmask 254976
    %142 = vst.msk [vmem:[#allocation2] sm:$0x3] %vm141, %v140
    // Predicated region
    $region42: #{esm_classification_head.1} parent=1 // pred_check
      %p143 = pneg %p56
    $region43: #{esm_classification_head.1} parent=1 // pred_check_branch
      %145 = sbr.rel (%p143) target = $region45
    $region44: #{esm_classification_head.1} parent=1 // pred_region
      %v148 = vrot.slane %v63, 7
      %vm149 = vcmask 1045509
      %v150 = vsel %vm149, %v148, %v62
      %vm152 = vcmask 259076
      %153 = vst.msk [vmem:[#allocation3 - $0x4] sm:$0x30] %vm152, %v150
      %s154 = sld [smem:[#allocation4]]
      %v155 = vld [vmem:[#allocation2] sm:$0x3]
      %v156 = vmul.f32 %v155, 0.125
      %v157 = vld [vmem:[#allocation3] sm:$0x3]
      %v158 = vstv %s154
      %v159 = vmul.f32 %v157, %v158
      %v160 = vadd.f32 %v156, %v159
      %v161 = vld [vmem:[#allocation8] sm:$0xff]
      %v162 = vld [vmem:[#allocation8 + $0x8] sm:$0xff]
      %v163 = vld [vmem:[#allocation8 + $0x10] sm:$0xff]
      %v164 = vld [vmem:[#allocation8 + $0x18] sm:$0xff]
      %v165 = vld [vmem:[%s4] sm:$0x1]
      %v167 = vlaneseq
      %v168 = vshrl.u32 %v167, 7
      %v169 = vsub.s32 0, %v168
      %v170 = vrot.slane %v165, %v169
      %vm172 = vcmask 261120
      %v174 = vsel %vm172, %v160, 0
      %v177 = vsel %vm172, %v161, 0
      %v180 = vsel %vm172, %v162, 0
      %v183 = vsel %vm172, %v163, 0
      %v186 = vsel %vm172, %v164, 0
      %188 = vmatprep.subr.mxu0 0.0
      %189 = vmatpush1.xpose.msra.mxu0 0.0
      %190 = vmatprep.subr.mxu0 0.0
      %191 = vmatpush1.xpose.msra.mxu0 0.0
      %192 = vmatprep.subr.mxu0 0.0
      %193 = vmatpush1.xpose.msra.mxu0 0.0
      %194 = vmatprep.subr.mxu0 0.0
      %195 = vmatpush1.xpose.msra.mxu0 0.0
      %196 = vmatprep.subr.mxu0 0.0
      %197 = vmatpush1.xpose.msra.mxu0 0.0
      %198 = vmatprep.subr.mxu0 0.0
      %199 = vmatpush1.xpose.msra.mxu0 0.0
      %200 = vmatprep.subr.mxu0 0.0
      %201 = vmatpush1.xpose.msra.mxu0 0.0
      %202 = vmatprep.subr.mxu0 0.0
      %203 = vmatpush1.xpose.msra.mxu0 0.0
      %204 = vmatprep.subr.mxu0 0.0
      %205 = vmatpush1.xpose.msra.mxu0 0.0
      %206 = vmatprep.subr.mxu0 0.0
      %207 = vmatpush1.xpose.msra.mxu0 0.0
      %208 = vmatprep.subr.mxu0 0.0
      %209 = vmatpush1.xpose.msra.mxu0 0.0
      %210 = vmatprep.subr.mxu0 0.0
      %211 = vmatpush1.xpose.msra.mxu0 0.0
      %212 = vmatprep.subr.mxu0 0.0
      %213 = vmatpush1.xpose.msra.mxu0 %v186
      %214 = vmatprep.subr.mxu0 0.0
      %215 = vmatpush1.xpose.msra.mxu0 %v183
      %216 = vmatprep.subr.mxu0 0.0
      %217 = vmatpush1.xpose.msra.mxu0 %v180
      %218 = vmatprep.subr.mxu0 0.0
      %219 = vmatpush1.xpose.msra.mxu0 %v177
      %220 = vmatprep.subr.mxu0 0.0
      %221 = vmatpush2.xpose.msra.mxu0 0.0
      %222 = vmatprep.subr.mxu0 0.0
      %223 = vmatpush2.xpose.msra.mxu0 0.0
      %224 = vmatprep.subr.mxu0 0.0
      %225 = vmatpush2.xpose.msra.mxu0 0.0
      %226 = vmatprep.subr.mxu0 0.0
      %227 = vmatpush2.xpose.msra.mxu0 0.0
      %228 = vmatprep.subr.mxu0 0.0
      %229 = vmatpush2.xpose.msra.mxu0 0.0
      %230 = vmatprep.subr.mxu0 0.0
      %231 = vmatpush2.xpose.msra.mxu0 0.0
      %232 = vmatprep.subr.mxu0 0.0
      %233 = vmatpush2.xpose.msra.mxu0 0.0
      %234 = vmatprep.subr.mxu0 0.0
      %235 = vmatpush2.xpose.msra.mxu0 0.0
      %236 = vmatprep.subr.mxu0 0.0
      %237 = vmatpush2.xpose.msra.mxu0 0.0
      %238 = vmatprep.subr.mxu0 0.0
      %239 = vmatpush2.xpose.msra.mxu0 0.0
      %240 = vmatprep.subr.mxu0 0.0
      %241 = vmatpush2.xpose.msra.mxu0 0.0
      %242 = vmatprep.subr.mxu0 0.0
      %243 = vmatpush2.xpose.msra.mxu0 0.0
      %244 = vmatprep.subr.mxu0 0.0
      %245 = vmatpush2.xpose.msra.mxu0 0.0
      %246 = vmatprep.subr.mxu0 0.0
      %247 = vmatpush2.xpose.msra.mxu0 0.0
      %248 = vmatprep.subr.mxu0 0.0
      %249 = vmatpush2.xpose.msra.mxu0 0.0
      %250 = vmatprep.subr.mxu0 0.0
      %251 = vmatpush2.xpose.msra.mxu0 0.0
      %252 = vmatprep.mubr.f32.mxu0 0.0
      %253 = vmatmul.mubr.f32.gmra.mxu0 %v174
      %v254 = vpop.f32.mrf.mxu0
      %v255 = vadd.f32 %v170, %v254
      %v256 = vpop.f32.mrf.mxu0
      %257 = vdwg.mxu0
      %v258 = vtanh.pop %v255
      %v259 = vld [vmem:[%s5] sm:$0xf]
      %v260 = vld [vmem:[%s6] sm:$0x1]
      %v262 = vlaneseq
      %v263 = vshrl.u32 %v262, 7
      %v264 = vsub.s32 0, %v263
      %v265 = vrot.slane %v260, %v264
      %v268 = vsel %vm172, %v258, 0
      %v271 = vsel %vm172, %v259, 0
      %273 = vmatprep.subr.mxu0 0.0
      %274 = vmatpush1.xpose.msra.mxu0 0.0
      %275 = vmatprep.subr.mxu0 0.0
      %276 = vmatpush1.xpose.msra.mxu0 0.0
      %277 = vmatprep.subr.mxu0 0.0
      %278 = vmatpush1.xpose.msra.mxu0 0.0
      %279 = vmatprep.subr.mxu0 0.0
      %280 = vmatpush1.xpose.msra.mxu0 0.0
      %281 = vmatprep.subr.mxu0 0.0
      %282 = vmatpush1.xpose.msra.mxu0 0.0
      %283 = vmatprep.subr.mxu0 0.0
      %284 = vmatpush1.xpose.msra.mxu0 0.0
      %285 = vmatprep.subr.mxu0 0.0
      %286 = vmatpush1.xpose.msra.mxu0 0.0
      %287 = vmatprep.subr.mxu0 0.0
      %288 = vmatpush1.xpose.msra.mxu0 0.0
      %289 = vmatprep.subr.mxu0 0.0
      %290 = vmatpush1.xpose.msra.mxu0 0.0
      %291 = vmatprep.subr.mxu0 0.0
      %292 = vmatpush1.xpose.msra.mxu0 0.0
      %293 = vmatprep.subr.mxu0 0.0
      %294 = vmatpush1.xpose.msra.mxu0 0.0
      %295 = vmatprep.subr.mxu0 0.0
      %296 = vmatpush1.xpose.msra.mxu0 0.0
      %297 = vmatprep.subr.mxu0 0.0
      %298 = vmatpush1.xpose.msra.mxu0 0.0
      %299 = vmatprep.subr.mxu0 0.0
      %300 = vmatpush1.xpose.msra.mxu0 0.0
      %301 = vmatprep.subr.mxu0 0.0
      %302 = vmatpush1.xpose.msra.mxu0 0.0
      %303 = vmatprep.subr.mxu0 0.0
      %304 = vmatpush1.xpose.msra.mxu0 %v271
      %305 = vmatprep.subr.mxu0 0.0
      %306 = vmatpush2.xpose.msra.mxu0 0.0
      %307 = vmatprep.subr.mxu0 0.0
      %308 = vmatpush2.xpose.msra.mxu0 0.0
      %309 = vmatprep.subr.mxu0 0.0
      %310 = vmatpush2.xpose.msra.mxu0 0.0
      %311 = vmatprep.subr.mxu0 0.0
      %312 = vmatpush2.xpose.msra.mxu0 0.0
      %313 = vmatprep.subr.mxu0 0.0
      %314 = vmatpush2.xpose.msra.mxu0 0.0
      %315 = vmatprep.subr.mxu0 0.0
      %316 = vmatpush2.xpose.msra.mxu0 0.0
      %317 = vmatprep.subr.mxu0 0.0
      %318 = vmatpush2.xpose.msra.mxu0 0.0
      %319 = vmatprep.subr.mxu0 0.0
      %320 = vmatpush2.xpose.msra.mxu0 0.0
      %321 = vmatprep.subr.mxu0 0.0
      %322 = vmatpush2.xpose.msra.mxu0 0.0
      %323 = vmatprep.subr.mxu0 0.0
      %324 = vmatpush2.xpose.msra.mxu0 0.0
      %325 = vmatprep.subr.mxu0 0.0
      %326 = vmatpush2.xpose.msra.mxu0 0.0
      %327 = vmatprep.subr.mxu0 0.0
      %328 = vmatpush2.xpose.msra.mxu0 0.0
      %329 = vmatprep.subr.mxu0 0.0
      %330 = vmatpush2.xpose.msra.mxu0 0.0
      %331 = vmatprep.subr.mxu0 0.0
      %332 = vmatpush2.xpose.msra.mxu0 0.0
      %333 = vmatprep.subr.mxu0 0.0
      %334 = vmatpush2.xpose.msra.mxu0 0.0
      %335 = vmatprep.subr.mxu0 0.0
      %336 = vmatpush2.xpose.msra.mxu0 0.0
      %337 = vmatprep.mubr.f32.mxu0 0.0
      %338 = vmatmul.mubr.f32.gmra.mxu0 %v268
      %v339 = vpop.f32.mrf.mxu0
      %v340 = vadd.f32 %v265, %v339
      %v341 = vpop.f32.mrf.mxu0
      %342 = vdwg.mxu0
      %vm343 = vcmask 25600
      %344 = vst.msk [vmem:[#allocation10] sm:$0x3] %vm343, %v340
    $region45: #{esm_classification_head.1} parent=1 // pred_fallthru
      _
    // Predicated region
    $region46: #{esm_classification_head.1} parent=1 // pred_check
      _
    $region47: #{esm_classification_head.1} parent=1 // pred_check_branch
      %346 = sbr.rel (0) target = $region49
    $region48: #{esm_classification_head.1} parent=1 // pred_region
      %s348 = ssub.s32 32, 32
      %349 = vsyncadd [#allocation7], %s348
      %s351 = sshll.u32 [#allocation10], 4
      %s352 = int_to_ptr.vmem [resolvable:$true] %s351
      %354 = dma.vmem_to_hbm [thread:$0]  %s352, 32, %s7, [#allocation7]
    $region49: #{esm_classification_head.1} parent=1 // pred_fallthru
      _
    // Predicated region
    $region50: #{esm_classification_head.1} parent=1 // pred_check
      _
    $region51: #{esm_classification_head.1} parent=1 // pred_check_branch
      %356 = sbr.rel (0) target = $region53
    $region52: #{esm_classification_head.1} parent=1 // pred_region
      %357 = dma.done [#allocation7], 32
    $region53: #{esm_classification_head.1} parent=1 // pred_fallthru
      _
    %358 = vsyncpa [#allocation6], 1
    %359 = vsyncpa [#allocation9], 1
    %360 = vsyncpa [#allocation7], 1

</llo_original>
